<compile_context>
chip_gen: v7x
topology: tpu7x:2x2x1
jax: 0.10.0
libtpu: 0.0.40
codegen_flags: <defaults>
</compile_context>

<pallas_src>
import functools

import jax
import jax.numpy as jnp
from jax.experimental import pallas as pl
from jax.experimental.pallas import tpu as pltpu


def _hsi_decomp_kernel(c1, beta_ref, x_ref, out_ref):
    # beta_ref: SMEM (B*C1,) f32        flat per-batch mixing weights
    # x_ref:    VMEM (1, C1, t_r, LANE) one batch, one row-tile of flattened HW
    # out_ref:  VMEM (1, 1, t_r, LANE)  weighted channel sum for that tile
    b = pl.program_id(1)
    # Unrolled scalar*vector FMA chain over the tiny channel axis. Scalars come
    # from SMEM and splat via sreg; casts are per channel slice so they
    # interleave with the FMAs.
    acc = x_ref[0, 0].astype(jnp.float32) * beta_ref[b * c1]
    for c in range(1, c1):
        acc = acc + x_ref[0, c].astype(jnp.float32) * beta_ref[b * c1 + c]
    out_ref[0, 0] = acc.astype(out_ref.dtype)


def _ceil_div(a, b):
    return -(-a // b)


def _pick_lane(s):
    """Lane (last-dim) width: a multiple of 128, preferring exact divisors of S."""
    for lane in (2048, 1024, 512, 256, 128):
        if s % lane == 0 and s // lane >= 8:     # no pad, sublane-dense rows
            return lane
    for lane in (2048, 1024, 512, 256, 128):
        if s % lane == 0:                        # no pad
            return lane
    return 128                                   # one-time pad of < 128 elems/row


def _pick_tile_rows(c1, rows_total, lane, itemsize, target_block_bytes, batch):
    """Row-tile height: pack-aligned, within VMEM budget, >= ~4 total grid steps."""
    pack = max(8, 32 // max(1, itemsize))        # 8 f32, 16 bf16, 32 int8/fp8
    rows = target_block_bytes // max(1, c1 * lane * itemsize)
    rows = max(pack, (rows // pack) * pack)
    # Cap so B * n_row_tiles >= ~4 when possible: the double-buffer pipeline
    # then has enough steps to hide the first-block DMA and last writeback.
    want_tiles = max(1, _ceil_div(4, batch))
    cap = max(pack, _ceil_div(_ceil_div(rows_total, want_tiles), pack) * pack)
    rows = min(rows, cap)
    if rows >= rows_total:
        return rows_total                        # full extent is always legal
    return int(rows)


def hsi_decomposition_forward(x, weights, *,
                              target_block_bytes=8 * 1024 * 1024,
                              vmem_limit_bytes=32 * 1024 * 1024):
    """x: (B, C-1, H, W) NCHW float; weights: (B, C-1, 1). Returns (restore, weights)."""
    B, C1, H, W = x.shape
    assert weights.shape == (B, C1, 1), (weights.shape, (B, C1, 1))
    assert C1 >= 1

    itemsize = jnp.dtype(x.dtype).itemsize
    S = H * W
    lane = _pick_lane(S)
    Sp = _ceil_div(S, lane) * lane
    R = Sp // lane

    # Flatten spatial axes into a lane-dense (B, C1, R, LANE) view. The merging
    # / splitting reshapes are free (contiguous); the pad (only when
    # S % lane != 0) is a one-time copy accepted by the perf review.
    xf = x.reshape(B, C1, S)
    if Sp != S:
        xf = jnp.pad(xf, ((0, 0), (0, 0), (0, Sp - S)))
    xf = xf.reshape(B, C1, R, lane)

    t_r = _pick_tile_rows(C1, R, lane, itemsize, target_block_bytes, B)
    n_r = pl.cdiv(R, t_r)

    # Flat per-batch weight table in SMEM (1-D avoids 2-D SMEM padding).
    beta1d = weights.reshape(B * C1).astype(jnp.float32)

    kernel = functools.partial(_hsi_decomp_kernel, C1)

    flops = 2 * B * C1 * H * W
    bytes_accessed = itemsize * (B * C1 * Sp + B * Sp) + 4 * B * C1

    out_flat = pl.pallas_call(
        kernel,
        out_shape=jax.ShapeDtypeStruct((B, 1, R, lane), x.dtype),
        grid_spec=pltpu.PrefetchScalarGridSpec(
            num_scalar_prefetch=0,
            # Spatial-tile axis first (usually the large one) so megacore
            # sharding on v7x splits real work; both axes are independent.
            grid=(n_r, B),
            in_specs=[
                # Tiny weight table: whole, in scalar memory.
                pl.BlockSpec(memory_space=pltpu.MemorySpace.SMEM),
                # One batch element, one row tile, all channels. Channel stays a
                # leading block dim so every channel slice is a sublane-dense
                # (t_r, LANE) tile with a lane-dense 128-multiple last dim.
                pl.BlockSpec((1, C1, t_r, lane), lambda r, b: (b, 0, r, 0)),
            ],
            out_specs=pl.BlockSpec((1, 1, t_r, lane), lambda r, b: (b, 0, r, 0)),
        ),
        compiler_params=pltpu.CompilerParams(
            dimension_semantics=("parallel", "parallel"),
            vmem_limit_bytes=vmem_limit_bytes,
        ),
        cost_estimate=pl.CostEstimate(
            flops=flops, transcendentals=0, bytes_accessed=bytes_accessed),
    )(beta1d, xf)

    restore = out_flat.reshape(B, 1, Sp)
    if Sp != S:
        restore = restore[:, :, :S]
    restore = restore.reshape(B, 1, H, W)
    return restore, weights


def init_hsi_weights(key, bs, in_ch):
    # Mirrors nn.init.trunc_normal_(std=0.02) (truncation at +/-2 absolute is
    # ~+/-100 std at this scale, i.e. effectively untruncated).
    w = jax.random.truncated_normal(
        key, -2.0, 2.0, (bs, in_ch - 1, 1), jnp.float32) * 0.02
    return w


if __name__ == "__main__":
    B, in_ch, H, W = 2, 4, 16, 16
    C1 = in_ch - 1

    key = jax.random.PRNGKey(0)
    kx, kw = jax.random.split(key)

    # forward() consumes the "split" image with one spectral band removed,
    # hence in_ch - 1 channels.
    x = jax.random.normal(kx, (B, C1, H, W), dtype=jnp.float32)
    weights = init_hsi_weights(kw, B, in_ch)

    restore, beta = hsi_decomposition_forward(x, weights)
    restore = jax.block_until_ready(restore)

    # Pure-JAX reference replicating the PyTorch transpose/einsum/transpose chain.
    xt = jnp.transpose(x, (0, 3, 2, 1))                       # (B, W, H, C-1)
    y = jnp.einsum('bhwc,bcd->bhwd', xt, weights)             # (B, W, H, 1)
    ref = jnp.transpose(y, (0, 3, 2, 1))                      # (B, 1, H, W)

    assert restore.shape == (B, 1, H, W)
    assert beta.shape == (B, C1, 1)
    assert jnp.allclose(restore, ref, atol=1e-5, rtol=1e-5)

    print("KERNEL_OK")
</pallas_src>

<mosaic_0001>
module attributes {stable_mosaic.version = 11 : i64} {
  func.func @_hsi_decomp_kernel(%arg0: i32, %arg1: i32, %arg2: memref<6xf32, #tpu.memory_space<smem>>, %arg3: memref<1x3x1x256xf32, #tpu.memory_space<vmem>>, %arg4: memref<1x1x1x256xf32, #tpu.memory_space<vmem>>) attributes {dimension_semantics = [#tpu.dimension_semantics<parallel>, #tpu.dimension_semantics<parallel>], iteration_bounds = array<i64: 1, 2>, scalar_prefetch = 0 : i64, scratch_operands = 0 : i64, tpu.core_type = #tpu.core_type<tc>, window_params = [{transform_indices = @transform_0, window_bounds = array<i64: 6>}, {transform_indices = @transform_1, window_bounds = array<i64: 1, 3, 1, 256>}, {transform_indices = @transform_2, window_bounds = array<i64: 1, 1, 1, 256>}]} {
    %c0 = arith.constant 0 : index
    %c0_0 = arith.constant 0 : index
    %c0_1 = arith.constant 0 : index
    %c0_2 = arith.constant 0 : index
    %0 = vector.load %arg3[%c0, %c0_0, %c0_1, %c0_2] : memref<1x3x1x256xf32, #tpu.memory_space<vmem>>, vector<1x1x1x256xf32>
    %1 = vector.shape_cast %0 : vector<1x1x1x256xf32> to vector<1x256xf32>
    %c3_i32 = arith.constant 3 : i32
    %2 = arith.muli %arg1, %c3_i32 : i32
    %3 = arith.index_cast %2 : i32 to index
    %4 = memref.load %arg2[%3] : memref<6xf32, #tpu.memory_space<smem>>
    %5 = vector.broadcast %4 : f32 to vector<1x256xf32>
    %6 = arith.mulf %1, %5 : vector<1x256xf32>
    %c0_3 = arith.constant 0 : index
    %c1 = arith.constant 1 : index
    %c0_4 = arith.constant 0 : index
    %c0_5 = arith.constant 0 : index
    %7 = vector.load %arg3[%c0_3, %c1, %c0_4, %c0_5] : memref<1x3x1x256xf32, #tpu.memory_space<vmem>>, vector<1x1x1x256xf32>
    %8 = vector.shape_cast %7 : vector<1x1x1x256xf32> to vector<1x256xf32>
    %c3_i32_6 = arith.constant 3 : i32
    %9 = arith.muli %arg1, %c3_i32_6 : i32
    %c1_i32 = arith.constant 1 : i32
    %10 = arith.addi %9, %c1_i32 : i32
    %11 = arith.index_cast %10 : i32 to index
    %12 = memref.load %arg2[%11] : memref<6xf32, #tpu.memory_space<smem>>
    %13 = vector.broadcast %12 : f32 to vector<1x256xf32>
    %14 = arith.mulf %8, %13 : vector<1x256xf32>
    %15 = arith.addf %6, %14 : vector<1x256xf32>
    %c0_7 = arith.constant 0 : index
    %c2 = arith.constant 2 : index
    %c0_8 = arith.constant 0 : index
    %c0_9 = arith.constant 0 : index
    %16 = vector.load %arg3[%c0_7, %c2, %c0_8, %c0_9] : memref<1x3x1x256xf32, #tpu.memory_space<vmem>>, vector<1x1x1x256xf32>
    %17 = vector.shape_cast %16 : vector<1x1x1x256xf32> to vector<1x256xf32>
    %c3_i32_10 = arith.constant 3 : i32
    %18 = arith.muli %arg1, %c3_i32_10 : i32
    %c2_i32 = arith.constant 2 : i32
    %19 = arith.addi %18, %c2_i32 : i32
    %20 = arith.index_cast %19 : i32 to index
    %21 = memref.load %arg2[%20] : memref<6xf32, #tpu.memory_space<smem>>
    %22 = vector.broadcast %21 : f32 to vector<1x256xf32>
    %23 = arith.mulf %17, %22 : vector<1x256xf32>
    %24 = arith.addf %15, %23 : vector<1x256xf32>
    %c0_11 = arith.constant 0 : index
    %c0_12 = arith.constant 0 : index
    %c0_13 = arith.constant 0 : index
    %c0_14 = arith.constant 0 : index
    %25 = vector.load %arg4[%c0_11, %c0_12, %c0_13, %c0_14] : memref<1x1x1x256xf32, #tpu.memory_space<vmem>>, vector<1x1x1x256xf32>
    %26 = vector.shape_cast %25 : vector<1x1x1x256xf32> to vector<1x256xf32>
    %27 = vector.shape_cast %24 : vector<1x256xf32> to vector<1x1x1x256xf32>
    tpu.vector_store %arg4[%c0_11, %c0_12, %c0_13, %c0_14], %27 {strides = array<i32>} : memref<1x1x1x256xf32, #tpu.memory_space<vmem>>, vector<1x1x1x256xf32>,
    return
  }
  func.func @transform_0(%arg0: i32, %arg1: i32) -> i32 {
    %c0_i32 = arith.constant 0 : i32
    %c0_i32_0 = arith.constant 0 : i32
    return %c0_i32 : i32
  }
  func.func @transform_1(%arg0: i32, %arg1: i32) -> (i32, i32, i32, i32) {
    %c0_i32 = arith.constant 0 : i32
    %c0_i32_0 = arith.constant 0 : i32
    %c0_i32_1 = arith.constant 0 : i32
    return %arg1, %c0_i32, %arg0, %c0_i32_0 : i32, i32, i32, i32
  }
  func.func @transform_2(%arg0: i32, %arg1: i32) -> (i32, i32, i32, i32) {
    %c0_i32 = arith.constant 0 : i32
    %c0_i32_0 = arith.constant 0 : i32
    %c0_i32_1 = arith.constant 0 : i32
    return %arg1, %c0_i32, %arg0, %c0_i32_0 : i32, i32, i32, i32
  }
}

</mosaic_0001>

<llo_original>
// kernel: tpu_custom_call.1
$region0: #{tpu_custom_call.1}
  #allocation0 [shape = 'u32[]', space=smem, size = 0x4, offset = 0x4, fixed_abs, tag = 'smem constant byte address 0x4 - core index']
  #allocation1 [shape = 'u32[144,128]{1,0:T(1,128)}', space=vmem, size = 0x12000, scoped, tag = 'internal scratch']
  %s0 = inlined_call_operand.hbm [shape: f32[6], index: 0, kind: input, shape index: {}]
  %s1 = inlined_call_operand.hbm [shape: f32[2,3,1,256], index: 1, kind: input, shape index: {}]
  %s2 = inlined_call_operand.hbm [shape: f32[2,1,1,256], index: 2, kind: output, shape index: {}]
  %s3 = sld [smem:[#allocation0]]
  $region49: #{tpu_custom_call.1} parent=0
    _
  %s5 = ssub.s32 1, %s3
  %s6 = scalar_select 0, %s5, %s3
  $region1: #{tpu_custom_call.1} parent=0
    #allocation2 [shape = 'u8[512]{0}', space=smem, size = 0x200, scoped, tag = 'input window, operand 0, single buffered']
    #allocation3 [shape = 's32[2]{0}', space=sflag, size = 0x8, scoped, tag = 'scoped memory for tpu_custom_call.1']
    #allocation4 [shape = 's32[2]{0}', space=sflag, size = 0x8, scoped, tag = 'scoped memory for tpu_custom_call.1']
    #allocation5 [shape = 's32[2]{0}', space=sflag, size = 0x8, scoped, tag = 'scoped memory for tpu_custom_call.1']
    #allocation6 [shape = 'u8[6144]{0}', space=vmem, size = 0x1800, scoped, tag = 'input window, operand 1']
    #allocation7 [shape = 'u8[2048]{0}', space=vmem, size = 0x800, scoped, tag = 'output window, operand 0']
    %7 = vsyncpa [#allocation5], 0
    %8 = vsyncpa [#allocation3], 0
    %s9 = scalar_lea.sflag [#allocation3], 1
    %10 = vsyncpa %s9, 0
    %11 = vsyncpa [#allocation4], 0
    %s12 = scalar_lea.sflag [#allocation4], 1
    %13 = vsyncpa %s12, 0
    loop: start=0, step=1, limit=4
    $region2: #{tpu_custom_call.1} parent=1 // loop_pre_header
      _
    $region3: #{tpu_custom_call.1} parent=1 // loop_header
      %s15 = sphi 0, %s19
      %p16 = scmp.ge.s32.totalorder %s15, 4
      %s22 = sphi 0, %s34
      %s23 = sphi 0, %s30
      %s24 = sphi 0, %s22
      %s25 = sphi 0, %s23
      %s26 = sphi 0, %s24
      %s27 = sphi 0, %s25
      %s35 = sphi 0, %s35
      %s37 = sphi 0, %s35
      %s38 = sphi 0, %s37
      %s52 = sphi 0, %s38
      %s60 = sphi 0, %s62
      %s63 = sphi 0, %s60
      %s64 = sphi 0, %s63
      %s80 = sphi 0, %s64
      %s88 = sphi 0, %s90
      %s91 = sphi 0, %s88
      %s92 = sphi 0, %s91
      %s108 = sphi 0, %s92
    $region4: #{tpu_custom_call.1} parent=1 // loop_header_branch
      %18 = sbr.rel (%p16) target = $region8
    $region5: #{tpu_custom_call.1} parent=1 // loop_body
      %s20 = ssub.s32 %s15, 1
      %s21 = ssub.s32 %s15, 2
      %s28 = sadd.s32 1, %s23
      %p29 = scmp.ge.s32.totalorder %s28, 2
      %s30 = scalar_select %p29, 0, %s28
      %s31 = sadd.s32 1, %s22
      %s32 = scalar_select %p29, %s31, %s22
      %p33 = scmp.ge.s32.totalorder %s32, 1
      %s34 = scalar_select %p33, 0, %s32
      %s36 = sadd.s32 %s35, 1
      %p39 = scmp.eq.s32.totalorder %s15, 1
      %p40 = scmp.ne.s32.totalorder %s35, %s37
      %p41 = scmp.eq.s32.totalorder %s15, 0
      %p42 = por %p40, %p41
      %p43 = scmp.ne.s32.totalorder %s35, %s37
      %p44 = scmp.eq.s32.totalorder %s20, 1
      %p45 = por %p43, %p44
      %p46 = scmp.ne.s32.totalorder %s37, %s38
      %p47 = scmp.eq.s32.totalorder %s20, 0
      %p48 = por %p46, %p47
      %p49 = scmp.ne.s32.totalorder %s37, %s38
      %p50 = scmp.eq.s32.totalorder %s21, 1
      %p51 = por %p49, %p50
      %p53 = scmp.ne.s32.totalorder %s38, %s52
      %p54 = scmp.eq.s32.totalorder %s21, 0
      %p55 = por %p53, %p54
      %s56 = ssub.s32 %s23, %s30
      %s57 = ssub.s32 %s22, %s34
      %s58 = sor.u32 %s56, %s57
      %p59 = scmp.eq.s32.totalorder %s58, 0
      %s61 = sadd.s32 %s60, 1
      %s62 = scalar_select %p59, %s60, %s61
      %p65 = pneg %p59
      %p66 = scmp.eq.s32.totalorder %s15, 1
      %p67 = por %p65, %p66
      %p68 = scmp.ne.s32.totalorder %s60, %s63
      %p69 = scmp.eq.s32.totalorder %s15, 0
      %p70 = por %p68, %p69
      %p71 = scmp.ne.s32.totalorder %s60, %s63
      %p72 = scmp.eq.s32.totalorder %s20, 1
      %p73 = por %p71, %p72
      %p74 = scmp.ne.s32.totalorder %s63, %s64
      %p75 = scmp.eq.s32.totalorder %s20, 0
      %p76 = por %p74, %p75
      %p77 = scmp.ne.s32.totalorder %s63, %s64
      %p78 = scmp.eq.s32.totalorder %s21, 1
      %p79 = por %p77, %p78
      %p81 = scmp.ne.s32.totalorder %s64, %s80
      %p82 = scmp.eq.s32.totalorder %s21, 0
      %p83 = por %p81, %p82
      %s84 = ssub.s32 %s23, %s30
      %s85 = ssub.s32 %s22, %s34
      %s86 = sor.u32 %s84, %s85
      %p87 = scmp.eq.s32.totalorder %s86, 0
      %s89 = sadd.s32 %s88, 1
      %s90 = scalar_select %p87, %s88, %s89
      %p93 = pneg %p87
      %p94 = scmp.eq.s32.totalorder %s15, 1
      %p95 = por %p93, %p94
      %p96 = scmp.ne.s32.totalorder %s88, %s91
      %p97 = scmp.eq.s32.totalorder %s15, 0
      %p98 = por %p96, %p97
      %p99 = scmp.ne.s32.totalorder %s88, %s91
      %p100 = scmp.eq.s32.totalorder %s20, 1
      %p101 = por %p99, %p100
      %p102 = scmp.ne.s32.totalorder %s91, %s92
      %p103 = scmp.eq.s32.totalorder %s20, 0
      %p104 = por %p102, %p103
      %p105 = scmp.ne.s32.totalorder %s91, %s92
      %p106 = scmp.eq.s32.totalorder %s21, 1
      %p107 = por %p105, %p106
      %p109 = scmp.ne.s32.totalorder %s92, %s108
      %p110 = scmp.eq.s32.totalorder %s21, 0
      %p111 = por %p109, %p110
      %p112 = scmp.le.s32.totalorder 1, %s15
      %p113 = scmp.lt.s32.totalorder %s15, 3
      %p114 = pnand %p112, %p113
      %p115 = pneg %p114
      // Predicated region
      $region9: #{tpu_custom_call.1} parent=5 // pred_check
        _
      $region10: #{tpu_custom_call.1} parent=5 // pred_check_branch
        %117 = sbr.rel (%p114) target = $region12
      $region11: #{tpu_custom_call.1} parent=5 // pred_region
        %s118 = ssub.s32 %s15, 1
        // Predicated region
        $region13: #{tpu_custom_call.1} parent=11 // pred_check
          %p119 = pneg %p48
        $region14: #{tpu_custom_call.1} parent=11 // pred_check_branch
          %121 = sbr.rel (%p119) target = $region16
        $region15: #{tpu_custom_call.1} parent=11 // pred_region
          %s123 = ssub.s32 16, 16
          %124 = vsyncadd [#allocation5], %s123
          %127 = dma.hbm_to_smem %s0, 16, [#allocation2], [#allocation5]
        $region16: #{tpu_custom_call.1} parent=11 // pred_fallthru
          _
      $region12: #{tpu_custom_call.1} parent=5 // pred_fallthru
        _
      %p128 = scmp.lt.s32.totalorder %s15, 2
      // Predicated region
      $region17: #{tpu_custom_call.1} parent=5 // pred_check
        %p129 = pneg %p128
      $region18: #{tpu_custom_call.1} parent=5 // pred_check_branch
        %131 = sbr.rel (%p129) target = $region20
      $region19: #{tpu_custom_call.1} parent=5 // pred_region
        // Predicated region
        $region21: #{tpu_custom_call.1} parent=19 // pred_check
          %p132 = pneg %p70
        $region22: #{tpu_custom_call.1} parent=19 // pred_check_branch
          %134 = sbr.rel (%p132) target = $region24
        $region23: #{tpu_custom_call.1} parent=19 // pred_region
          %s135 = sand.u32 %s60, 1
          %s136 = scalar_lea.sflag [#allocation3], %s135
          %s137 = sand.u32 %s60, 1
          %s138 = smul.addr %s137, 6
          %s139 = scalar_lea.vmem [#allocation6], %s138
          %s141 = ssub.s32 96, 96
          %142 = vsyncadd %s136, %s141
          %s143 = smul.addr %s22, 2
          %s144 = smul.addr %s23, 6
          %s145 = sadd.s32 %s143, %s144
          %s146 = smul.addr %s145, 16
          %s147 = scalar_lea.hbm %s1, %s146
          %s148 = sshll.u32 %s139, 4
          %s149 = int_to_ptr.vmem [resolvable:$true] %s148
          %154 = dma.hbm_to_vmem [thread:$0]  %s147, 96, %s149, %s136, 32, 32, 2
        $region24: #{tpu_custom_call.1} parent=19 // pred_fallthru
          _
      $region20: #{tpu_custom_call.1} parent=5 // pred_fallthru
        _
      %p155 = scmp.le.s32.totalorder 1, %s15
      %p156 = scmp.lt.s32.totalorder %s15, 3
      %p157 = pnand %p155, %p156
      %p158 = pneg %p157
      // Predicated region
      $region25: #{tpu_custom_call.1} parent=5 // pred_check
        _
      $region26: #{tpu_custom_call.1} parent=5 // pred_check_branch
        %160 = sbr.rel (%p157) target = $region28
      $region27: #{tpu_custom_call.1} parent=5 // pred_region
        %s161 = ssub.s32 %s15, 1
        // Predicated region
        $region29: #{tpu_custom_call.1} parent=27 // pred_check
          %p162 = pneg %p48
        $region30: #{tpu_custom_call.1} parent=27 // pred_check_branch
          %164 = sbr.rel (%p162) target = $region32
        $region31: #{tpu_custom_call.1} parent=27 // pred_region
          %165 = dma.done [#allocation5], 16
        $region32: #{tpu_custom_call.1} parent=27 // pred_fallthru
          _
        %s166 = sand.u32 %s63, 1
        %s167 = scalar_lea.sflag [#allocation3], %s166
        %s168 = sand.u32 %s63, 1
        %s169 = smul.addr %s168, 6
        %s170 = scalar_lea.vmem [#allocation6], %s169
        // Predicated region
        $region33: #{tpu_custom_call.1} parent=27 // pred_check
          %p171 = pneg %p76
        $region34: #{tpu_custom_call.1} parent=27 // pred_check_branch
          %173 = sbr.rel (%p171) target = $region36
        $region35: #{tpu_custom_call.1} parent=27 // pred_region
          %174 = dma.done %s167, 96
        $region36: #{tpu_custom_call.1} parent=27 // pred_fallthru
          _
        %175 = sfence
        %p176 = pneg %p48
        %p177 = pneg %p45
        %s178 = sand.u32 %s63, 1
        %s179 = scalar_lea.sflag [#allocation3], %s178
        %s180 = sand.u32 %s63, 1
        %s181 = smul.addr %s180, 6
        %s182 = scalar_lea.vmem [#allocation6], %s181
        %p183 = pneg %p76
        %p184 = pneg %p73
        %p185 = pneg %p104
        %p186 = pneg %p101
        %s187 = sand.u32 %s91, 1
        %s188 = scalar_lea.sflag [#allocation4], %s187
        %s189 = sand.u32 %s91, 1
        %s190 = smul.addr %s189, 2
        %s191 = scalar_lea.vmem [#allocation7], %s190
        %v192 = vld [vmem:[%s170] sm:$0x3]
        %s193 = smul.u32 %s25, 3
        %s194 = sld [smem:[#allocation2 + %s193]]
        %v195 = vstv %s194
        %v196 = vmul.f32 %v192, %v195
        %s197 = scalar_lea.vmem %s170, 2 [#allocation6]
        %v198 = vld [vmem:[%s197] sm:$0x3]
        %s199 = sadd.s32 %s193, 1
        %s200 = sld [smem:[#allocation2 + %s199]]
        %v201 = vstv %s200
        %v202 = vmul.f32 %v198, %v201
        %v203 = vadd.f32 %v196, %v202
        %s204 = scalar_lea.vmem %s170, 4 [#allocation6]
        %v205 = vld [vmem:[%s204] sm:$0x3]
        %s206 = sadd.s32 %s193, 2
        %s207 = sld [smem:[#allocation2 + %s206]]
        %v208 = vstv %s207
        %v209 = vmul.f32 %v205, %v208
        %v210 = vadd.f32 %v203, %v209
        %v211 = vlaneseq
        %vm212 = vcmp.ge.s32.totalorder %v211, 0
        %vm213 = vcmp.lt.s32.totalorder %v211, 256
        %vm214 = vmand %vm212, %vm213
        %215 = vst.msk [vmem:[%s191] sm:$0x3] %vm214, %v210
        %s216 = sand.u32 %s91, 1
        %s217 = scalar_lea.sflag [#allocation4], %s216
        %s218 = sand.u32 %s91, 1
        %s219 = smul.addr %s218, 2
        %s220 = scalar_lea.vmem [#allocation7], %s219
        // Predicated region
        $region37: #{tpu_custom_call.1} parent=27 // pred_check
          %p221 = pneg %p101
        $region38: #{tpu_custom_call.1} parent=27 // pred_check_branch
          %223 = sbr.rel (%p221) target = $region40
        $region39: #{tpu_custom_call.1} parent=27 // pred_region
          %s225 = ssub.s32 32, 32
          %226 = vsyncadd %s217, %s225
          %s227 = smul.addr %s24, 2
          %s228 = smul.addr %s25, 2
          %s229 = sadd.s32 %s227, %s228
          %s230 = smul.addr %s229, 16
          %s231 = scalar_lea.hbm %s2, %s230
          %s233 = sshll.u32 %s220, 4
          %s234 = int_to_ptr.vmem [resolvable:$true] %s233
          %236 = dma.vmem_to_hbm [thread:$0]  %s234, 32, %s231, %s217
        $region40: #{tpu_custom_call.1} parent=27 // pred_fallthru
          _
      $region28: #{tpu_custom_call.1} parent=5 // pred_fallthru
        _
      %p237 = scmp.le.s32.totalorder 2, %s15
      // Predicated region
      $region41: #{tpu_custom_call.1} parent=5 // pred_check
        %p238 = pneg %p237
      $region42: #{tpu_custom_call.1} parent=5 // pred_check_branch
        %240 = sbr.rel (%p238) target = $region44
      $region43: #{tpu_custom_call.1} parent=5 // pred_region
        %s241 = ssub.s32 %s15, 2
        // Predicated region
        $region45: #{tpu_custom_call.1} parent=43 // pred_check
          %p242 = pneg %p107
        $region46: #{tpu_custom_call.1} parent=43 // pred_check_branch
          %244 = sbr.rel (%p242) target = $region48
        $region47: #{tpu_custom_call.1} parent=43 // pred_region
          %s245 = sand.u32 %s92, 1
          %s246 = scalar_lea.sflag [#allocation4], %s245
          %s247 = sand.u32 %s92, 1
          %s248 = smul.addr %s247, 2
          %s249 = scalar_lea.vmem [#allocation7], %s248
          %250 = dma.done %s246, 32
        $region48: #{tpu_custom_call.1} parent=43 // pred_fallthru
          _
      $region44: #{tpu_custom_call.1} parent=5 // pred_fallthru
        _
    $region6: #{tpu_custom_call.1} parent=1 // loop_footer
      %s19 = sadd.s32 1, %s15
    $region7: #{tpu_custom_call.1} parent=1 // loop_footer_branch
      %14 = sbr.rel target = $region3
    $region8: #{tpu_custom_call.1} parent=1 // loop_exit
      _
    %251 = vsyncpa [#allocation3], 1
    %s252 = scalar_lea.sflag [#allocation3], 1
    %253 = vsyncpa %s252, 1
    %254 = vsyncpa [#allocation4], 1
    %s255 = scalar_lea.sflag [#allocation4], 1
    %256 = vsyncpa %s255, 1
    %257 = vsyncpa [#allocation5], 1
    %s258 = scalar_lea.sflag [#allocation5], 1
    %259 = vsyncpa %s258, 1

</llo_original>
